<compile_context>
chip_gen: v5e
topology: v5e:2x2
jax: 0.10.0
libtpu: 0.0.40
codegen_flags: <defaults>
</compile_context>

<pallas_src>
import functools

import jax
import jax.numpy as jnp
from jax.experimental import pallas as pl
from jax.experimental.pallas import tpu as pltpu

BN_EPS = 1e-5


def _round_up(x, m):
    return ((x + m - 1) // m) * m


def _plan(n, out_dim, esize, device_kind):
    """Pick row tile TM, contraction tile TK, padded sizes, XW residency and a
    VMEM limit from the actual per-step footprint vs device VMEM."""
    kind = device_kind.lower()
    is_v7 = "v7" in kind
    vmem_cap = (64 if is_v7 else 128) * 1024 * 1024   # v7x: 64 MiB/TC, else 128 MiB
    budget = (vmem_cap * 3) // 4                      # headroom for compiler scratch

    od = _round_up(out_dim, 128)                      # lane-dense output stores
    n128 = _round_up(n, 128)

    tm = min(n128, 1024)
    tk = min(n128, 1024)
    n_pad0 = _round_up(n, max(tm, tk))
    # XW resident (single DMA) if a double-buffered copy fits comfortably.
    xw_resident = 2 * n_pad0 * od * esize <= min(16 * 1024 * 1024, budget // 3)

    def footprint(tm_, tk_):
        f = 2 * tm_ * tk_ * esize                                         # adj (2-buf)
        f += (2 * n_pad0 * od * esize) if xw_resident else (2 * tk_ * od * esize)
        f += 2 * tm_ * od * esize                                         # y out (2-buf)
        f += tm_ * od * 4                                                 # f32 acc scratch
        f += 4 * od * 4 * 2                                               # stat outputs
        return f

    while footprint(tm, tk) > budget and (tm > 128 or tk > 128):
        if tk >= tm and tk > 128:
            tk //= 2
        elif tm > 128:
            tm //= 2
        else:
            break

    n_pad = _round_up(n, max(tm, tk))
    # v7x has 2 TensorCores: make sure the "parallel" row axis has >= 2 tiles.
    if is_v7 and (n_pad // tm) < 2 and tm >= 256:
        tm //= 2

    vmem_limit = int(min(budget, max(32 * 1024 * 1024,
                                     footprint(tm, tk) + 8 * 1024 * 1024)))
    return tm, tk, n_pad, od, xw_resident, vmem_limit


# ---------------------------------------------------------------------------
# Kernel: tiled adj @ XW with fused (masked) BatchNorm partial moments.
# ---------------------------------------------------------------------------
def _make_adj_matmul_kernel(tm, tk, m_tiles, k_tiles, n_valid, xw_resident):
    def kernel(adj_ref, xw_ref, y_ref, sum_ref, m2_ref, acc_ref):
        # program_id-derived values live at the kernel's TOP LEVEL only (never
        # inside pl.when bodies); trivial grid axes use static 0 so the
        # single-tile case emits no program_id at all.
        i = pl.program_id(0) if m_tiles > 1 else 0
        k = pl.program_id(1) if k_tiles > 1 else 0

        row = i * tm + jax.lax.broadcasted_iota(jnp.int32, (tm, 1), 0)
        valid = row < n_valid                                        # (TM, 1)
        cnt = jnp.clip(n_valid - i * tm, 0, tm).astype(jnp.float32)  # valid rows here
        inv_cnt = 1.0 / jnp.maximum(cnt, 1.0)

        def _init():
            acc_ref[...] = jnp.zeros_like(acc_ref)

        def _finalize():
            y = acc_ref[...]                                   # (TM, OD) f32
            y_ref[...] = y.astype(y_ref.dtype)                 # bias dropped: cancels in BN
            yv = jnp.where(valid, y, 0.0)
            s = jnp.sum(yv, axis=0, keepdims=True)             # (1, OD) tile sum
            mu = s * inv_cnt                                   # tile mean
            d = jnp.where(valid, y - mu, 0.0)
            sum_ref[...] = s[None]                             # (1, 1, OD)
            m2_ref[...] = jnp.sum(d * d, axis=0, keepdims=True)[None]

        if k_tiles > 1:
            pl.when(k == 0)(_init)
        else:
            _init()

        if xw_resident and k_tiles > 1:
            # Whole XW is VMEM-resident; slice the current 128-aligned K stripe.
            kk = pl.multiple_of(k * tk, 128)
            xw_blk = xw_ref[pl.ds(kk, tk), :]
        else:
            xw_blk = xw_ref[...]

        # MXU: (TM, TK) @ (TK, OD), f32 accumulation.
        acc_ref[...] += jnp.dot(adj_ref[...], xw_blk,
                                preferred_element_type=jnp.float32)

        if k_tiles > 1:
            pl.when(k == k_tiles - 1)(_finalize)
        else:
            _finalize()

    return kernel


@functools.partial(
    jax.jit, static_argnames=("num_entities", "num_relations", "compute_dtype"))
def wgcn_forward(x, r, edge_index, edge_type, params,
                 num_entities, num_relations, compute_dtype=jnp.bfloat16):
    """WeightedGCNLayer.forward: XLA glue for the scatter, Pallas for the hot path."""
    N = num_entities
    out_dim = params["weight"].shape[1]
    esize = jnp.dtype(compute_dtype).itemsize

    try:
        device_kind = jax.devices()[0].device_kind
    except Exception:  # pragma: no cover
        device_kind = ""
    TM, TK, N_pad, OD, xw_resident, vmem_limit = _plan(N, out_dim, esize, device_kind)
    m_tiles = N_pad // TM
    k_tiles = N_pad // TK

    # ---- self edges (self_edge_dropout = 0 -> keep all) + symmetrized scatter:
    #      alpha goes into both (s, d) and (d, s) in ONE scatter-add, which is
    #      identical to (adj + adj.T) on the COO tensor.  Built DIRECTLY in the
    #      compute dtype (no f32 N^2 intermediate). ----
    self_nodes = jnp.arange(N, dtype=edge_index.dtype)
    src = jnp.concatenate([edge_index[0], self_nodes])
    dst = jnp.concatenate([edge_index[1], self_nodes])
    et = jnp.concatenate(
        [edge_type, jnp.full((N,), num_relations - 1, dtype=edge_type.dtype)])
    alpha_r = params["alpha"][et, 0].astype(compute_dtype)
    rows = jnp.concatenate([src, dst])
    cols = jnp.concatenate([dst, src])
    vals = jnp.concatenate([alpha_r, alpha_r])
    adj_c = jnp.zeros((N_pad, N_pad), compute_dtype).at[rows, cols].add(vals)

    # ---- XW hoisted out of the adjacency kernel: computed once in f32,
    #      placed into a lane-padded (N_pad, OD) slab in the compute dtype. ----
    xw = jnp.dot(x.astype(jnp.float32), params["weight"].astype(jnp.float32),
                 preferred_element_type=jnp.float32)
    xw_c = jnp.zeros((N_pad, OD), compute_dtype).at[:N, :out_dim].set(
        xw.astype(compute_dtype))

    # NOTE: the per-feature bias is NOT streamed into the kernel: training-mode
    # BatchNorm subtracts the batch mean, so a constant per-feature bias cancels
    # exactly.  # TODO(synk): re-add bias if BN running-stat updates are modeled.

    cost = pl.CostEstimate(
        flops=2 * N_pad * N_pad * OD,
        transcendentals=0,
        bytes_accessed=int(N_pad * N_pad * esize
                           + (N_pad * OD * esize if xw_resident
                              else m_tiles * N_pad * OD * esize)
                           + N_pad * OD * esize))

    xw_spec = (pl.BlockSpec((N_pad, OD), lambda i, k: (0, 0)) if xw_resident
               else pl.BlockSpec((TK, OD), lambda i, k: (k, 0)))

    y, psum, pm2 = pl.pallas_call(
        _make_adj_matmul_kernel(TM, TK, m_tiles, k_tiles, N, xw_resident),
        out_shape=(
            jax.ShapeDtypeStruct((N_pad, OD), compute_dtype),
            jax.ShapeDtypeStruct((m_tiles, 1, OD), jnp.float32),
            jax.ShapeDtypeStruct((m_tiles, 1, OD), jnp.float32),
        ),
        grid_spec=pltpu.PrefetchScalarGridSpec(
            num_scalar_prefetch=0,
            grid=(m_tiles, k_tiles),                           # reduction axis last
            in_specs=[
                pl.BlockSpec((TM, TK), lambda i, k: (i, k)),   # adj row/K tile
                xw_spec,                                       # XW resident or K tile
            ],
            out_specs=[
                pl.BlockSpec((TM, OD), lambda i, k: (i, 0)),
                pl.BlockSpec((1, 1, OD), lambda i, k: (i, 0, 0)),
                pl.BlockSpec((1, 1, OD), lambda i, k: (i, 0, 0)),
            ],
            scratch_shapes=[pltpu.VMEM((TM, OD), jnp.float32)],
        ),
        compiler_params=pltpu.CompilerParams(
            dimension_semantics=("parallel", "arbitrary"),
            vmem_limit_bytes=vmem_limit,
        ),
        cost_estimate=cost,
    )(adj_c, xw_c)

    # ---- BatchNorm finalize (training mode, biased variance) from per-tile
    #      partial moments, combined Welford-style (numerically stable). ----
    sums = psum[:, 0, :out_dim]                    # (m_tiles, out_dim)
    m2s = pm2[:, 0, :out_dim]
    n_i = jnp.clip(N - jnp.arange(m_tiles, dtype=jnp.float32) * TM, 0.0, float(TM))
    mean = jnp.sum(sums, axis=0) / N
    tile_mean = sums / jnp.maximum(n_i, 1.0)[:, None]
    var = (jnp.sum(m2s, axis=0)
           + jnp.sum(n_i[:, None] * (tile_mean - mean[None, :]) ** 2, axis=0)) / N
    inv_std = jax.lax.rsqrt(jnp.maximum(var, 0.0) + BN_EPS)
    scale = params["bn_gamma"].astype(jnp.float32) * inv_std
    shift = params["bn_beta"].astype(jnp.float32) - mean * scale

    # Tiny fused fma + slice: done in XLA (touches only N x out_dim; no extra
    # pallas_call launch, per review).
    out = y[:N, :out_dim].astype(jnp.float32) * scale[None, :] + shift[None, :]
    return out, r


def reference_forward(x, r, edge_index, edge_type, params, num_entities,
                      num_relations):
    """Pure-JAX (f32) reference for correctness checking."""
    N = num_entities
    self_nodes = jnp.arange(N, dtype=edge_index.dtype)
    ei = jnp.concatenate([edge_index, jnp.stack([self_nodes, self_nodes])], axis=1)
    et = jnp.concatenate(
        [edge_type, jnp.full((N,), num_relations - 1, dtype=edge_type.dtype)], axis=0)
    alpha_r = params["alpha"][et, 0]
    adj = jnp.zeros((N, N), jnp.float32).at[ei[0], ei[1]].add(alpha_r)
    adj = adj + adj.T
    out = adj @ (x @ params["weight"]) + params["bias"][None, :]
    mean = out.mean(axis=0, keepdims=True)
    var = ((out - mean) ** 2).mean(axis=0, keepdims=True)
    out = (out - mean) / jnp.sqrt(var + BN_EPS)
    out = out * params["bn_gamma"][None, :] + params["bn_beta"][None, :]
    return out, r


if __name__ == "__main__":
    key = jax.random.PRNGKey(0)

    # Small synthetic problem consistent with the module:
    num_entities = 64               # N
    base_num_relations = 5
    num_relations = base_num_relations * 2 + 1   # R (inverse rels + self-rel) = 11
    in_dim = 32
    out_dim = 128
    num_edges = 96                  # directed edges

    k_x, k_r, k_src, k_dst, k_et, k_w, k_a = jax.random.split(key, 7)

    x = jax.random.normal(k_x, (num_entities, in_dim), jnp.float32)
    r = jax.random.normal(k_r, (num_relations, in_dim), jnp.float32)  # passthrough

    src = jax.random.randint(k_src, (num_edges,), 0, num_entities, jnp.int32)
    dst = jax.random.randint(k_dst, (num_edges,), 0, num_entities, jnp.int32)
    edge_index = jnp.stack([src, dst])                                # (2, E)
    # edge types in [1, num_relations - 1): 0 = padding_idx, R-1 = self-edge rel
    edge_type = jax.random.randint(k_et, (num_edges,), 1, num_relations - 1, jnp.int32)

    weight = jax.random.normal(k_w, (in_dim, out_dim), jnp.float32) * 0.1
    alpha = jax.random.normal(k_a, (num_relations + 1, 1), jnp.float32)
    alpha = alpha.at[0].set(0.0)                        # padding_idx = 0
    params = {
        "weight": weight,
        "alpha": alpha,
        "bias": jnp.zeros((out_dim,), jnp.float32),     # bias_init(zeros)
        "bn_gamma": jnp.ones((out_dim,), jnp.float32),  # BatchNorm1d defaults
        "bn_beta": jnp.zeros((out_dim,), jnp.float32),
    }

    # Fast path (bf16 adjacency / XW streaming, f32 MXU accumulation).
    out_bf16, r_out = wgcn_forward(x, r, edge_index, edge_type, params,
                                   num_entities=num_entities,
                                   num_relations=num_relations,
                                   compute_dtype=jnp.bfloat16)
    jax.block_until_ready(out_bf16)

    # Exactness check path (f32 streaming) against the pure-JAX reference.
    out_f32, _ = wgcn_forward(x, r, edge_index, edge_type, params,
                              num_entities=num_entities,
                              num_relations=num_relations,
                              compute_dtype=jnp.float32)
    jax.block_until_ready(out_f32)

    ref_out, _ = reference_forward(x, r, edge_index, edge_type, params,
                                   num_entities, num_relations)

    assert out_f32.shape == (num_entities, out_dim)
    assert out_bf16.shape == (num_entities, out_dim)
    assert jnp.allclose(out_f32, ref_out, atol=1e-3, rtol=1e-3), "f32 mismatch vs reference"
    assert jnp.allclose(out_bf16, ref_out, atol=5e-2, rtol=5e-2), "bf16 mismatch vs reference"
    assert jnp.array_equal(r_out, r)

    # TODO(synk): BatchNorm running-stat (momentum) buffer update is not modeled
    # (inference-mode running stats live outside this forward kernel).
    print("KERNEL_OK")
</pallas_src>

<mosaic_0001>
module attributes {stable_mosaic.version = 11 : i64} {
  func.func @kernel(%arg0: i32, %arg1: i32, %arg2: memref<128x128xbf16, #tpu.memory_space<vmem>>, %arg3: memref<128x128xbf16, #tpu.memory_space<vmem>>, %arg4: memref<128x128xbf16, #tpu.memory_space<vmem>>, %arg5: memref<1x1x128xf32, #tpu.memory_space<vmem>>, %arg6: memref<1x1x128xf32, #tpu.memory_space<vmem>>, %arg7: memref<128x128xf32, #tpu.memory_space<vmem>>) attributes {dimension_semantics = [#tpu.dimension_semantics<parallel>, #tpu.dimension_semantics<arbitrary>], iteration_bounds = array<i64: 1, 1>, scalar_prefetch = 0 : i64, scratch_operands = 1 : i64, tpu.core_type = #tpu.core_type<tc>, window_params = [{transform_indices = @transform_0, window_bounds = array<i64: 128, 128>}, {pipeline_mode = #tpu.pipeline_mode<synchronous>, transform_indices = @transform_1, window_bounds = array<i64: 128, 128>}, {transform_indices = @transform_2, window_bounds = array<i64: 128, 128>}, {transform_indices = @transform_3, window_bounds = array<i64: 1, 1, 128>}, {transform_indices = @transform_4, window_bounds = array<i64: 1, 1, 128>}]} {
    %0 = tpu.iota {dimensions = array<i32: 0>} : vector<128x1xi32>
    %c0_i32 = arith.constant 0 : i32
    %1 = vector.broadcast %c0_i32 : i32 to vector<128x1xi32>
    %2 = arith.addi %1, %0 : vector<128x1xi32>
    %c64_i32 = arith.constant 64 : i32
    %3 = vector.broadcast %c64_i32 : i32 to vector<128x1xi32>
    %4 = arith.cmpi slt, %2, %3 : vector<128x1xi32>
    %c64_i32_0 = arith.constant 64 : i32
    %c0_i32_1 = arith.constant 0 : i32
    %c128_i32 = arith.constant 128 : i32
    %5 = arith.maxsi %c0_i32_1, %c64_i32_0 : i32
    %6 = arith.minsi %c128_i32, %5 : i32
    %7 = arith.sitofp %6 : i32 to f32
    %cst = arith.constant 1.000000e+00 : f32
    %8 = arith.maximumf %7, %cst : f32
    %cst_2 = arith.constant 1.000000e+00 : f32
    %9 = arith.divf %cst_2, %8 : f32
    %cst_3 = arith.constant 0.000000e+00 : f32
    %10 = vector.broadcast %cst_3 : f32 to vector<128x128xf32>
    %c0 = arith.constant 0 : index
    %c0_4 = arith.constant 0 : index
    %11 = vector.load %arg7[%c0, %c0_4] : memref<128x128xf32, #tpu.memory_space<vmem>>, vector<128x128xf32>
    tpu.vector_store %arg7[%c0, %c0_4], %10 {strides = array<i32>} : memref<128x128xf32, #tpu.memory_space<vmem>>, vector<128x128xf32>,
    %c0_5 = arith.constant 0 : index
    %c0_6 = arith.constant 0 : index
    %12 = vector.load %arg3[%c0_5, %c0_6] : memref<128x128xbf16, #tpu.memory_space<vmem>>, vector<128x128xbf16>
    %c0_7 = arith.constant 0 : index
    %c0_8 = arith.constant 0 : index
    %13 = vector.load %arg7[%c0_7, %c0_8] : memref<128x128xf32, #tpu.memory_space<vmem>>, vector<128x128xf32>
    %c0_9 = arith.constant 0 : index
    %c0_10 = arith.constant 0 : index
    %14 = vector.load %arg2[%c0_9, %c0_10] : memref<128x128xbf16, #tpu.memory_space<vmem>>, vector<128x128xbf16>
    %cst_11 = arith.constant dense<0.000000e+00> : vector<128x128xf32>
    %15 = tpu.matmul %14, %12, %cst_11 {dimension_numbers = #tpu.dot_dimension_numbers<[1], [0], [0], [1], [0, 0, 1, 1], [], []>} : vector<128x128xbf16>, vector<128x128xbf16>, vector<128x128xf32> -> vector<128x128xf32>
    %16 = arith.addf %13, %15 : vector<128x128xf32>
    %c0_12 = arith.constant 0 : index
    %c0_13 = arith.constant 0 : index
    %17 = vector.load %arg7[%c0_12, %c0_13] : memref<128x128xf32, #tpu.memory_space<vmem>>, vector<128x128xf32>
    tpu.vector_store %arg7[%c0_12, %c0_13], %16 {strides = array<i32>} : memref<128x128xf32, #tpu.memory_space<vmem>>, vector<128x128xf32>,
    %c0_14 = arith.constant 0 : index
    %c0_15 = arith.constant 0 : index
    %18 = vector.load %arg7[%c0_14, %c0_15] : memref<128x128xf32, #tpu.memory_space<vmem>>, vector<128x128xf32>
    %19 = arith.truncf %18 : vector<128x128xf32> to vector<128x128xbf16>
    %c0_16 = arith.constant 0 : index
    %c0_17 = arith.constant 0 : index
    %20 = vector.load %arg4[%c0_16, %c0_17] : memref<128x128xbf16, #tpu.memory_space<vmem>>, vector<128x128xbf16>
    tpu.vector_store %arg4[%c0_16, %c0_17], %19 {strides = array<i32>} : memref<128x128xbf16, #tpu.memory_space<vmem>>, vector<128x128xbf16>,
    %cst_18 = arith.constant 0.000000e+00 : f32
    %21 = vector.shape_cast %4 : vector<128x1xi1> to vector<128x1xi1>
    %22 = vector.broadcast %21 : vector<128x1xi1> to vector<128x128xi1>
    %23 = vector.broadcast %cst_18 : f32 to vector<128x128xf32>
    %24 = arith.select %22, %18, %23 : vector<128x128xi1>, vector<128x128xf32>
    %cst_19 = arith.constant dense<0.000000e+00> : vector<128xf32>
    %25 = vector.multi_reduction <add>, %24, %cst_19 [0] : vector<128x128xf32> to vector<128xf32>
    %26 = vector.shape_cast %25 : vector<128xf32> to vector<1x128xf32>
    %27 = vector.broadcast %9 : f32 to vector<1x128xf32>
    %28 = arith.mulf %26, %27 : vector<1x128xf32>
    %29 = vector.broadcast %28 : vector<1x128xf32> to vector<128x128xf32>
    %30 = arith.subf %18, %29 : vector<128x128xf32>
    %cst_20 = arith.constant 0.000000e+00 : f32
    %31 = vector.shape_cast %4 : vector<128x1xi1> to vector<128x1xi1>
    %32 = vector.broadcast %31 : vector<128x1xi1> to vector<128x128xi1>
    %33 = vector.broadcast %cst_20 : f32 to vector<128x128xf32>
    %34 = arith.select %32, %30, %33 : vector<128x128xi1>, vector<128x128xf32>
    %35 = vector.shape_cast %26 : vector<1x128xf32> to vector<1x1x128xf32>
    %c0_21 = arith.constant 0 : index
    %c0_22 = arith.constant 0 : index
    %c0_23 = arith.constant 0 : index
    %36 = vector.load %arg5[%c0_21, %c0_22, %c0_23] : memref<1x1x128xf32, #tpu.memory_space<vmem>>, vector<1x1x128xf32>
    tpu.vector_store %arg5[%c0_21, %c0_22, %c0_23], %35 {strides = array<i32>} : memref<1x1x128xf32, #tpu.memory_space<vmem>>, vector<1x1x128xf32>,
    %37 = arith.mulf %34, %34 : vector<128x128xf32>
    %cst_24 = arith.constant dense<0.000000e+00> : vector<128xf32>
    %38 = vector.multi_reduction <add>, %37, %cst_24 [0] : vector<128x128xf32> to vector<128xf32>
    %39 = vector.shape_cast %38 : vector<128xf32> to vector<1x128xf32>
    %40 = vector.shape_cast %39 : vector<1x128xf32> to vector<1x1x128xf32>
    %c0_25 = arith.constant 0 : index
    %c0_26 = arith.constant 0 : index
    %c0_27 = arith.constant 0 : index
    %41 = vector.load %arg6[%c0_25, %c0_26, %c0_27] : memref<1x1x128xf32, #tpu.memory_space<vmem>>, vector<1x1x128xf32>
    tpu.vector_store %arg6[%c0_25, %c0_26, %c0_27], %40 {strides = array<i32>} : memref<1x1x128xf32, #tpu.memory_space<vmem>>, vector<1x1x128xf32>,
    return
  }
  func.func @transform_0(%arg0: i32, %arg1: i32) -> (i32, i32) {
    %c0_i32 = arith.constant 0 : i32
    return %arg0, %arg1 : i32, i32
  }
  func.func @transform_1(%arg0: i32, %arg1: i32) -> (i32, i32) {
    %c0_i32 = arith.constant 0 : i32
    %c0_i32_0 = arith.constant 0 : i32
    %c0_i32_1 = arith.constant 0 : i32
    return %c0_i32, %c0_i32_0 : i32, i32
  }
  func.func @transform_2(%arg0: i32, %arg1: i32) -> (i32, i32) {
    %c0_i32 = arith.constant 0 : i32
    %c0_i32_0 = arith.constant 0 : i32
    return %arg0, %c0_i32 : i32, i32
  }
  func.func @transform_3(%arg0: i32, %arg1: i32) -> (i32, i32, i32) {
    %c0_i32 = arith.constant 0 : i32
    %c0_i32_0 = arith.constant 0 : i32
    %c0_i32_1 = arith.constant 0 : i32
    return %arg0, %c0_i32, %c0_i32_0 : i32, i32, i32
  }
  func.func @transform_4(%arg0: i32, %arg1: i32) -> (i32, i32, i32) {
    %c0_i32 = arith.constant 0 : i32
    %c0_i32_0 = arith.constant 0 : i32
    %c0_i32_1 = arith.constant 0 : i32
    return %arg0, %c0_i32, %c0_i32_0 : i32, i32, i32
  }
}

</mosaic_0001>

<llo_original>
// kernel: wgcn_forward.1
$region0: #{wgcn_forward.1}
  #allocation0 [shape = 'u32[]', space=smem, size = 0x4, offset = 0x4, fixed_abs, tag = 'smem constant byte address 0x4 - core index']
  #allocation1 [shape = 'u32[72,128]{1,0:T(1,128)}', space=vmem, size = 0x9000, scoped, tag = 'internal scratch']
  #allocation2 [shape = 'f32[128,128]{1,0:T(8,128)}', space=vmem, size = 0x10000, scoped, tag = 'scratch operand']
  %s0 = inlined_call_operand.vmem [shape: bf16[128,128], index: 0, kind: input, shape index: {}]
  %s1 = inlined_call_operand.vmem [shape: bf16[128,128], index: 1, kind: input, shape index: {}]
  %s2 = inlined_call_operand.vmem [shape: bf16[128,128], index: 2, kind: output, shape index: {0}]
  %s3 = inlined_call_operand.vmem [shape: f32[1,1,128], index: 3, kind: output, shape index: {1}]
  %s4 = inlined_call_operand.vmem [shape: f32[1,1,128], index: 4, kind: output, shape index: {2}]
  %5 = xla_tuple %s2, %s3, %s4
  %s6 = sld [smem:[#allocation0]]
  $region34: #{wgcn_forward.1} parent=0
    _
  %s8 = ssub.s32 1, %s6
  %s9 = scalar_select 0, %s8, %s6
  // Predicated region
  $region2: #{wgcn_forward.1} parent=0 // pred_check
    _
  $region3: #{wgcn_forward.1} parent=0 // pred_check_branch
    %11 = sbr.rel (0) target = $region5
  $region4: #{wgcn_forward.1} parent=0 // pred_region
    _
  $region5: #{wgcn_forward.1} parent=0 // pred_fallthru
    _
  // Predicated region
  $region6: #{wgcn_forward.1} parent=0 // pred_check
    _
  $region7: #{wgcn_forward.1} parent=0 // pred_check_branch
    %13 = sbr.rel (0) target = $region9
  $region8: #{wgcn_forward.1} parent=0 // pred_region
    _
  $region9: #{wgcn_forward.1} parent=0 // pred_fallthru
    _
  %v14 = vlaneseq
  %v15 = vshrl.u32 %v14, 7
  %v16 = vadd.s32 %v15, 8
  %v17 = vadd.s32 %v15, 16
  %v18 = vadd.s32 %v15, 24
  %v19 = vadd.s32 %v15, 32
  %v20 = vadd.s32 %v15, 40
  %v21 = vadd.s32 %v15, 48
  %v22 = vadd.s32 %v15, 56
  %v23 = vadd.s32 %v15, 64
  %v24 = vadd.s32 %v15, 72
  %v25 = vadd.s32 %v15, 80
  %v26 = vadd.s32 %v15, 88
  %v27 = vadd.s32 %v15, 96
  %v28 = vadd.s32 %v15, 104
  %v29 = vadd.s32 %v15, 112
  %v30 = vadd.s32 %v15, 120
  %vm31 = vcmp.lt.s32.totalorder %v15, 64
  %vm32 = vcmp.lt.s32.totalorder %v16, 64
  %vm33 = vcmp.lt.s32.totalorder %v17, 64
  %vm34 = vcmp.lt.s32.totalorder %v18, 64
  %vm35 = vcmp.lt.s32.totalorder %v19, 64
  %vm36 = vcmp.lt.s32.totalorder %v20, 64
  %vm37 = vcmp.lt.s32.totalorder %v21, 64
  %vm38 = vcmp.lt.s32.totalorder %v22, 64
  %vm39 = vcmp.lt.s32.totalorder %v23, 64
  %vm40 = vcmp.lt.s32.totalorder %v24, 64
  %vm41 = vcmp.lt.s32.totalorder %v25, 64
  %vm42 = vcmp.lt.s32.totalorder %v26, 64
  %vm43 = vcmp.lt.s32.totalorder %v27, 64
  %vm44 = vcmp.lt.s32.totalorder %v28, 64
  %vm45 = vcmp.lt.s32.totalorder %v29, 64
  %vm46 = vcmp.lt.s32.totalorder %v30, 64
  %47 = vst [vmem:[#allocation2] sm:$0xff] 0.0
  %48 = vst [vmem:[#allocation2 + $0x8] sm:$0xff] 0.0
  %49 = vst [vmem:[#allocation2 + $0x10] sm:$0xff] 0.0
  %50 = vst [vmem:[#allocation2 + $0x18] sm:$0xff] 0.0
  %51 = vst [vmem:[#allocation2 + $0x20] sm:$0xff] 0.0
  %52 = vst [vmem:[#allocation2 + $0x28] sm:$0xff] 0.0
  %53 = vst [vmem:[#allocation2 + $0x30] sm:$0xff] 0.0
  %54 = vst [vmem:[#allocation2 + $0x38] sm:$0xff] 0.0
  %55 = vst [vmem:[#allocation2 + $0x40] sm:$0xff] 0.0
  %56 = vst [vmem:[#allocation2 + $0x48] sm:$0xff] 0.0
  %57 = vst [vmem:[#allocation2 + $0x50] sm:$0xff] 0.0
  %58 = vst [vmem:[#allocation2 + $0x58] sm:$0xff] 0.0
  %59 = vst [vmem:[#allocation2 + $0x60] sm:$0xff] 0.0
  %60 = vst [vmem:[#allocation2 + $0x68] sm:$0xff] 0.0
  %61 = vst [vmem:[#allocation2 + $0x70] sm:$0xff] 0.0
  %62 = vst [vmem:[#allocation2 + $0x78] sm:$0xff] 0.0
  %v63 = vld [vmem:[%s1] sm:$0xf]
  %v64 = vld [vmem:[%s1 + $0x4] sm:$0xf]
  %v65 = vld [vmem:[%s1 + $0x8] sm:$0xf]
  %v66 = vld [vmem:[%s1 + $0xc] sm:$0xf]
  %v67 = vld [vmem:[%s1 + $0x10] sm:$0xf]
  %v68 = vld [vmem:[%s1 + $0x14] sm:$0xf]
  %v69 = vld [vmem:[%s1 + $0x18] sm:$0xf]
  %v70 = vld [vmem:[%s1 + $0x1c] sm:$0xf]
  %v71 = vld [vmem:[%s1 + $0x20] sm:$0xf]
  %v72 = vld [vmem:[%s1 + $0x24] sm:$0xf]
  %v73 = vld [vmem:[%s1 + $0x28] sm:$0xf]
  %v74 = vld [vmem:[%s1 + $0x2c] sm:$0xf]
  %v75 = vld [vmem:[%s1 + $0x30] sm:$0xf]
  %v76 = vld [vmem:[%s1 + $0x34] sm:$0xf]
  %v77 = vld [vmem:[%s1 + $0x38] sm:$0xf]
  %v78 = vld [vmem:[%s1 + $0x3c] sm:$0xf]
  %v79 = vld [vmem:[#allocation2] sm:$0xff]
  %v80 = vld [vmem:[#allocation2 + $0x8] sm:$0xff]
  %v81 = vld [vmem:[#allocation2 + $0x10] sm:$0xff]
  %v82 = vld [vmem:[#allocation2 + $0x18] sm:$0xff]
  %v83 = vld [vmem:[#allocation2 + $0x20] sm:$0xff]
  %v84 = vld [vmem:[#allocation2 + $0x28] sm:$0xff]
  %v85 = vld [vmem:[#allocation2 + $0x30] sm:$0xff]
  %v86 = vld [vmem:[#allocation2 + $0x38] sm:$0xff]
  %v87 = vld [vmem:[#allocation2 + $0x40] sm:$0xff]
  %v88 = vld [vmem:[#allocation2 + $0x48] sm:$0xff]
  %v89 = vld [vmem:[#allocation2 + $0x50] sm:$0xff]
  %v90 = vld [vmem:[#allocation2 + $0x58] sm:$0xff]
  %v91 = vld [vmem:[#allocation2 + $0x60] sm:$0xff]
  %v92 = vld [vmem:[#allocation2 + $0x68] sm:$0xff]
  %v93 = vld [vmem:[#allocation2 + $0x70] sm:$0xff]
  %v94 = vld [vmem:[#allocation2 + $0x78] sm:$0xff]
  %v95 = vld [vmem:[%s0] sm:$0xf]
  %v96 = vld [vmem:[%s0 + $0x4] sm:$0xf]
  %v97 = vld [vmem:[%s0 + $0x8] sm:$0xf]
  %v98 = vld [vmem:[%s0 + $0xc] sm:$0xf]
  %v99 = vld [vmem:[%s0 + $0x10] sm:$0xf]
  %v100 = vld [vmem:[%s0 + $0x14] sm:$0xf]
  %v101 = vld [vmem:[%s0 + $0x18] sm:$0xf]
  %v102 = vld [vmem:[%s0 + $0x1c] sm:$0xf]
  %v103 = vld [vmem:[%s0 + $0x20] sm:$0xf]
  %v104 = vld [vmem:[%s0 + $0x24] sm:$0xf]
  %v105 = vld [vmem:[%s0 + $0x28] sm:$0xf]
  %v106 = vld [vmem:[%s0 + $0x2c] sm:$0xf]
  %v107 = vld [vmem:[%s0 + $0x30] sm:$0xf]
  %v108 = vld [vmem:[%s0 + $0x34] sm:$0xf]
  %v109 = vld [vmem:[%s0 + $0x38] sm:$0xf]
  %v110 = vld [vmem:[%s0 + $0x3c] sm:$0xf]
  %v127 = vunpack.c.l.b16 %v95
  %v128 = vunpack.c.l.b16 %v96
  %v129 = vunpack.c.l.b16 %v97
  %v130 = vunpack.c.l.b16 %v98
  %v131 = vunpack.c.l.b16 %v99
  %v132 = vunpack.c.l.b16 %v100
  %v133 = vunpack.c.l.b16 %v101
  %v134 = vunpack.c.l.b16 %v102
  %v135 = vunpack.c.l.b16 %v103
  %v136 = vunpack.c.l.b16 %v104
  %v137 = vunpack.c.l.b16 %v105
  %v138 = vunpack.c.l.b16 %v106
  %v139 = vunpack.c.l.b16 %v107
  %v140 = vunpack.c.l.b16 %v108
  %v141 = vunpack.c.l.b16 %v109
  %v142 = vunpack.c.l.b16 %v110
  %v143 = vpack.c.b16 %v128, %v127
  %v144 = vpack.c.b16 %v130, %v129
  %v145 = vpack.c.b16 %v132, %v131
  %v146 = vpack.c.b16 %v134, %v133
  %v147 = vpack.c.b16 %v136, %v135
  %v148 = vpack.c.b16 %v138, %v137
  %v149 = vpack.c.b16 %v140, %v139
  %v150 = vpack.c.b16 %v142, %v141
  %v175 = vunpack.c.l.b16 %v63
  %v176 = vunpack.c.l.b16 %v64
  %v177 = vunpack.c.l.b16 %v65
  %v178 = vunpack.c.l.b16 %v66
  %v179 = vunpack.c.l.b16 %v67
  %v180 = vunpack.c.l.b16 %v68
  %v181 = vunpack.c.l.b16 %v69
  %v182 = vunpack.c.l.b16 %v70
  %v183 = vunpack.c.l.b16 %v71
  %v184 = vunpack.c.l.b16 %v72
  %v185 = vunpack.c.l.b16 %v73
  %v186 = vunpack.c.l.b16 %v74
  %v187 = vunpack.c.l.b16 %v75
  %v188 = vunpack.c.l.b16 %v76
  %v189 = vunpack.c.l.b16 %v77
  %v190 = vunpack.c.l.b16 %v78
  %v191 = vpack.c.b16 %v176, %v175
  %v192 = vpack.c.b16 %v178, %v177
  %v193 = vpack.c.b16 %v180, %v179
  %v194 = vpack.c.b16 %v182, %v181
  %v195 = vpack.c.b16 %v184, %v183
  %v196 = vpack.c.b16 %v186, %v185
  %v197 = vpack.c.b16 %v188, %v187
  %v198 = vpack.c.b16 %v190, %v189
  %207 = vmatpush.bf16.msra.mxu0 %v198
  %208 = vmatpush.bf16.msra.mxu0 %v197
  %209 = vmatpush.bf16.msra.mxu0 %v196
  %210 = vmatpush.bf16.msra.mxu0 %v195
  %211 = vmatpush.bf16.msra.mxu0 %v194
  %212 = vmatpush.bf16.msra.mxu0 %v193
  %213 = vmatpush.bf16.msra.mxu0 %v192
  %214 = vmatpush.bf16.msra.mxu0 %v191
  %215 = vmatmul.bf16.gmra.mxu0 %v143
  %v216 = vpop.f32.mrf.mxu0
  %v217 = vadd.f32 0.0, %v216
  %v218 = vpop.f32.mrf.mxu0
  %v219 = vadd.f32 0.0, %v218
  %220 = vmatmul.bf16.gmra.mxu0 %v144
  %v221 = vpop.f32.mrf.mxu0
  %v222 = vadd.f32 0.0, %v221
  %v223 = vpop.f32.mrf.mxu0
  %v224 = vadd.f32 0.0, %v223
  %225 = vmatmul.bf16.gmra.mxu0 %v145
  %v226 = vpop.f32.mrf.mxu0
  %v227 = vadd.f32 0.0, %v226
  %v228 = vpop.f32.mrf.mxu0
  %v229 = vadd.f32 0.0, %v228
  %230 = vmatmul.bf16.gmra.mxu0 %v146
  %v231 = vpop.f32.mrf.mxu0
  %v232 = vadd.f32 0.0, %v231
  %v233 = vpop.f32.mrf.mxu0
  %v234 = vadd.f32 0.0, %v233
  %235 = vmatmul.bf16.gmra.mxu0 %v147
  %v236 = vpop.f32.mrf.mxu0
  %v237 = vadd.f32 0.0, %v236
  %v238 = vpop.f32.mrf.mxu0
  %v239 = vadd.f32 0.0, %v238
  %240 = vmatmul.bf16.gmra.mxu0 %v148
  %v241 = vpop.f32.mrf.mxu0
  %v242 = vadd.f32 0.0, %v241
  %v243 = vpop.f32.mrf.mxu0
  %v244 = vadd.f32 0.0, %v243
  %245 = vmatmul.bf16.gmra.mxu0 %v149
  %v246 = vpop.f32.mrf.mxu0
  %v247 = vadd.f32 0.0, %v246
  %v248 = vpop.f32.mrf.mxu0
  %v249 = vadd.f32 0.0, %v248
  %250 = vmatmul.bf16.gmra.mxu0 %v150
  %v251 = vpop.f32.mrf.mxu0
  %v252 = vadd.f32 0.0, %v251
  %v253 = vpop.f32.mrf.mxu0
  %v254 = vadd.f32 0.0, %v253
  %255 = vdwg.mxu0
  %v256 = vadd.f32 %v79, %v217
  %v257 = vadd.f32 %v80, %v219
  %v258 = vadd.f32 %v81, %v222
  %v259 = vadd.f32 %v82, %v224
  %v260 = vadd.f32 %v83, %v227
  %v261 = vadd.f32 %v84, %v229
  %v262 = vadd.f32 %v85, %v232
  %v263 = vadd.f32 %v86, %v234
  %v264 = vadd.f32 %v87, %v237
  %v265 = vadd.f32 %v88, %v239
  %v266 = vadd.f32 %v89, %v242
  %v267 = vadd.f32 %v90, %v244
  %v268 = vadd.f32 %v91, %v247
  %v269 = vadd.f32 %v92, %v249
  %v270 = vadd.f32 %v93, %v252
  %v271 = vadd.f32 %v94, %v254
  %272 = vst [vmem:[#allocation2] sm:$0xff] %v256
  %273 = vst [vmem:[#allocation2 + $0x8] sm:$0xff] %v257
  %274 = vst [vmem:[#allocation2 + $0x10] sm:$0xff] %v258
  %275 = vst [vmem:[#allocation2 + $0x18] sm:$0xff] %v259
  %276 = vst [vmem:[#allocation2 + $0x20] sm:$0xff] %v260
  %277 = vst [vmem:[#allocation2 + $0x28] sm:$0xff] %v261
  %278 = vst [vmem:[#allocation2 + $0x30] sm:$0xff] %v262
  %279 = vst [vmem:[#allocation2 + $0x38] sm:$0xff] %v263
  %280 = vst [vmem:[#allocation2 + $0x40] sm:$0xff] %v264
  %281 = vst [vmem:[#allocation2 + $0x48] sm:$0xff] %v265
  %282 = vst [vmem:[#allocation2 + $0x50] sm:$0xff] %v266
  %283 = vst [vmem:[#allocation2 + $0x58] sm:$0xff] %v267
  %284 = vst [vmem:[#allocation2 + $0x60] sm:$0xff] %v268
  %285 = vst [vmem:[#allocation2 + $0x68] sm:$0xff] %v269
  %286 = vst [vmem:[#allocation2 + $0x70] sm:$0xff] %v270
  %287 = vst [vmem:[#allocation2 + $0x78] sm:$0xff] %v271
  %v288 = vld [vmem:[#allocation2] sm:$0xff]
  %v289 = vld [vmem:[#allocation2 + $0x8] sm:$0xff]
  %v290 = vld [vmem:[#allocation2 + $0x10] sm:$0xff]
  %v291 = vld [vmem:[#allocation2 + $0x18] sm:$0xff]
  %v292 = vld [vmem:[#allocation2 + $0x20] sm:$0xff]
  %v293 = vld [vmem:[#allocation2 + $0x28] sm:$0xff]
  %v294 = vld [vmem:[#allocation2 + $0x30] sm:$0xff]
  %v295 = vld [vmem:[#allocation2 + $0x38] sm:$0xff]
  %v296 = vld [vmem:[#allocation2 + $0x40] sm:$0xff]
  %v297 = vld [vmem:[#allocation2 + $0x48] sm:$0xff]
  %v298 = vld [vmem:[#allocation2 + $0x50] sm:$0xff]
  %v299 = vld [vmem:[#allocation2 + $0x58] sm:$0xff]
  %v300 = vld [vmem:[#allocation2 + $0x60] sm:$0xff]
  %v301 = vld [vmem:[#allocation2 + $0x68] sm:$0xff]
  %v302 = vld [vmem:[#allocation2 + $0x70] sm:$0xff]
  %v303 = vld [vmem:[#allocation2 + $0x78] sm:$0xff]
  %v304 = vpack.c.bf16 %v288, %v288
  %v305 = vpack.c.bf16 %v289, %v289
  %v306 = vpack.c.bf16 %v290, %v290
  %v307 = vpack.c.bf16 %v291, %v291
  %v308 = vpack.c.bf16 %v292, %v292
  %v309 = vpack.c.bf16 %v293, %v293
  %v310 = vpack.c.bf16 %v294, %v294
  %v311 = vpack.c.bf16 %v295, %v295
  %v312 = vpack.c.bf16 %v296, %v296
  %v313 = vpack.c.bf16 %v297, %v297
  %v314 = vpack.c.bf16 %v298, %v298
  %v315 = vpack.c.bf16 %v299, %v299
  %v316 = vpack.c.bf16 %v300, %v300
  %v317 = vpack.c.bf16 %v301, %v301
  %v318 = vpack.c.bf16 %v302, %v302
  %v319 = vpack.c.bf16 %v303, %v303
  %320 = vst [vmem:[%s2] sm:$0xf] %v304
  %321 = vst [vmem:[%s2 + $0x4] sm:$0xf] %v305
  %322 = vst [vmem:[%s2 + $0x8] sm:$0xf] %v306
  %323 = vst [vmem:[%s2 + $0xc] sm:$0xf] %v307
  %324 = vst [vmem:[%s2 + $0x10] sm:$0xf] %v308
  %325 = vst [vmem:[%s2 + $0x14] sm:$0xf] %v309
  %326 = vst [vmem:[%s2 + $0x18] sm:$0xf] %v310
  %327 = vst [vmem:[%s2 + $0x1c] sm:$0xf] %v311
  %328 = vst [vmem:[%s2 + $0x20] sm:$0xf] %v312
  %329 = vst [vmem:[%s2 + $0x24] sm:$0xf] %v313
  %330 = vst [vmem:[%s2 + $0x28] sm:$0xf] %v314
  %331 = vst [vmem:[%s2 + $0x2c] sm:$0xf] %v315
  %332 = vst [vmem:[%s2 + $0x30] sm:$0xf] %v316
  %333 = vst [vmem:[%s2 + $0x34] sm:$0xf] %v317
  %334 = vst [vmem:[%s2 + $0x38] sm:$0xf] %v318
  %335 = vst [vmem:[%s2 + $0x3c] sm:$0xf] %v319
  %v336 = vsel %vm31, 1, 0
  %v337 = vsel %vm32, 1, 0
  %v338 = vsel %vm33, 1, 0
  %v339 = vsel %vm34, 1, 0
  %v340 = vsel %vm35, 1, 0
  %v341 = vsel %vm36, 1, 0
  %v342 = vsel %vm37, 1, 0
  %v343 = vsel %vm38, 1, 0
  %v344 = vsel %vm39, 1, 0
  %v345 = vsel %vm40, 1, 0
  %v346 = vsel %vm41, 1, 0
  %v347 = vsel %vm42, 1, 0
  %v348 = vsel %vm43, 1, 0
  %v349 = vsel %vm44, 1, 0
  %v350 = vsel %vm45, 1, 0
  %v351 = vsel %vm46, 1, 0
  %vm352 = vcmp.eq.s32.totalorder %v336, 1
  %vm353 = vcmp.eq.s32.totalorder %v337, 1
  %vm354 = vcmp.eq.s32.totalorder %v338, 1
  %vm355 = vcmp.eq.s32.totalorder %v339, 1
  %vm356 = vcmp.eq.s32.totalorder %v340, 1
  %vm357 = vcmp.eq.s32.totalorder %v341, 1
  %vm358 = vcmp.eq.s32.totalorder %v342, 1
  %vm359 = vcmp.eq.s32.totalorder %v343, 1
  %vm360 = vcmp.eq.s32.totalorder %v344, 1
  %vm361 = vcmp.eq.s32.totalorder %v345, 1
  %vm362 = vcmp.eq.s32.totalorder %v346, 1
  %vm363 = vcmp.eq.s32.totalorder %v347, 1
  %vm364 = vcmp.eq.s32.totalorder %v348, 1
  %vm365 = vcmp.eq.s32.totalorder %v349, 1
  %vm366 = vcmp.eq.s32.totalorder %v350, 1
  %vm367 = vcmp.eq.s32.totalorder %v351, 1
  %v368 = vsel %vm352, %v288, 0.0
  %v369 = vsel %vm353, %v289, 0.0
  %v370 = vsel %vm354, %v290, 0.0
  %v371 = vsel %vm355, %v291, 0.0
  %v372 = vsel %vm356, %v292, 0.0
  %v373 = vsel %vm357, %v293, 0.0
  %v374 = vsel %vm358, %v294, 0.0
  %v375 = vsel %vm359, %v295, 0.0
  %v376 = vsel %vm360, %v296, 0.0
  %v377 = vsel %vm361, %v297, 0.0
  %v378 = vsel %vm362, %v298, 0.0
  %v379 = vsel %vm363, %v299, 0.0
  %v380 = vsel %vm364, %v300, 0.0
  %v381 = vsel %vm365, %v301, 0.0
  %v382 = vsel %vm366, %v302, 0.0
  %v383 = vsel %vm367, %v303, 0.0
  %v384 = vadd.f32 %v368, %v369
  %v385 = vadd.f32 %v384, %v370
  %v386 = vadd.f32 %v385, %v371
  %v387 = vadd.f32 %v386, %v372
  %v388 = vadd.f32 %v387, %v373
  %v389 = vadd.f32 %v388, %v374
  %v390 = vadd.f32 %v389, %v375
  %v391 = vadd.f32 %v390, %v376
  %v392 = vadd.f32 %v391, %v377
  %v393 = vadd.f32 %v392, %v378
  %v394 = vadd.f32 %v393, %v379
  %v395 = vadd.f32 %v394, %v380
  %v396 = vadd.f32 %v395, %v381
  %v397 = vadd.f32 %v396, %v382
  %v398 = vadd.f32 %v397, %v383
  %v399 = vrot.slane %v398, 4
  %v400 = vadd.f32 %v398, %v399
  %v401 = vrot.slane %v400, 2
  %v402 = vadd.f32 %v400, %v401
  %v403 = vrot.slane %v402, 1
  %v404 = vadd.f32 %v402, %v403
  %v405 = vmul.f32 %v404, 0.015625
  %v406 = vsub.f32 %v288, %v405
  %v407 = vsub.f32 %v289, %v405
  %v408 = vsub.f32 %v290, %v405
  %v409 = vsub.f32 %v291, %v405
  %v410 = vsub.f32 %v292, %v405
  %v411 = vsub.f32 %v293, %v405
  %v412 = vsub.f32 %v294, %v405
  %v413 = vsub.f32 %v295, %v405
  %v414 = vsub.f32 %v296, %v405
  %v415 = vsub.f32 %v297, %v405
  %v416 = vsub.f32 %v298, %v405
  %v417 = vsub.f32 %v299, %v405
  %v418 = vsub.f32 %v300, %v405
  %v419 = vsub.f32 %v301, %v405
  %v420 = vsub.f32 %v302, %v405
  %v421 = vsub.f32 %v303, %v405
  %v422 = vsel %vm352, %v406, 0.0
  %v423 = vsel %vm353, %v407, 0.0
  %v424 = vsel %vm354, %v408, 0.0
  %v425 = vsel %vm355, %v409, 0.0
  %v426 = vsel %vm356, %v410, 0.0
  %v427 = vsel %vm357, %v411, 0.0
  %v428 = vsel %vm358, %v412, 0.0
  %v429 = vsel %vm359, %v413, 0.0
  %v430 = vsel %vm360, %v414, 0.0
  %v431 = vsel %vm361, %v415, 0.0
  %v432 = vsel %vm362, %v416, 0.0
  %v433 = vsel %vm363, %v417, 0.0
  %v434 = vsel %vm364, %v418, 0.0
  %v435 = vsel %vm365, %v419, 0.0
  %v436 = vsel %vm366, %v420, 0.0
  %v437 = vsel %vm367, %v421, 0.0
  %438 = vst [vmem:[%s3] sm:$0x1] %v404
  %v439 = vmul.f32 %v422, %v422
  %v440 = vmul.f32 %v423, %v423
  %v441 = vmul.f32 %v424, %v424
  %v442 = vmul.f32 %v425, %v425
  %v443 = vmul.f32 %v426, %v426
  %v444 = vmul.f32 %v427, %v427
  %v445 = vmul.f32 %v428, %v428
  %v446 = vmul.f32 %v429, %v429
  %v447 = vmul.f32 %v430, %v430
  %v448 = vmul.f32 %v431, %v431
  %v449 = vmul.f32 %v432, %v432
  %v450 = vmul.f32 %v433, %v433
  %v451 = vmul.f32 %v434, %v434
  %v452 = vmul.f32 %v435, %v435
  %v453 = vmul.f32 %v436, %v436
  %v454 = vmul.f32 %v437, %v437
  %v455 = vadd.f32 %v439, %v440
  %v456 = vadd.f32 %v455, %v441
  %v457 = vadd.f32 %v456, %v442
  %v458 = vadd.f32 %v457, %v443
  %v459 = vadd.f32 %v458, %v444
  %v460 = vadd.f32 %v459, %v445
  %v461 = vadd.f32 %v460, %v446
  %v462 = vadd.f32 %v461, %v447
  %v463 = vadd.f32 %v462, %v448
  %v464 = vadd.f32 %v463, %v449
  %v465 = vadd.f32 %v464, %v450
  %v466 = vadd.f32 %v465, %v451
  %v467 = vadd.f32 %v466, %v452
  %v468 = vadd.f32 %v467, %v453
  %v469 = vadd.f32 %v468, %v454
  %v470 = vrot.slane %v469, 4
  %v471 = vadd.f32 %v469, %v470
  %v472 = vrot.slane %v471, 2
  %v473 = vadd.f32 %v471, %v472
  %v474 = vrot.slane %v473, 1
  %v475 = vadd.f32 %v473, %v474
  %476 = vst [vmem:[%s4] sm:$0x1] %v475
  // Predicated region
  $region10: #{wgcn_forward.1} parent=0 // pred_check
    _
  $region11: #{wgcn_forward.1} parent=0 // pred_check_branch
    %478 = sbr.rel (0) target = $region13
  $region12: #{wgcn_forward.1} parent=0 // pred_region
    _
  $region13: #{wgcn_forward.1} parent=0 // pred_fallthru
    _
  // Predicated region
  $region14: #{wgcn_forward.1} parent=0 // pred_check
    _
  $region15: #{wgcn_forward.1} parent=0 // pred_check_branch
    %480 = sbr.rel (0) target = $region17
  $region16: #{wgcn_forward.1} parent=0 // pred_region
    _
  $region17: #{wgcn_forward.1} parent=0 // pred_fallthru
    _
  // Predicated region
  $region18: #{wgcn_forward.1} parent=0 // pred_check
    _
  $region19: #{wgcn_forward.1} parent=0 // pred_check_branch
    %482 = sbr.rel (0) target = $region21
  $region20: #{wgcn_forward.1} parent=0 // pred_region
    _
  $region21: #{wgcn_forward.1} parent=0 // pred_fallthru
    _
  // Predicated region
  $region22: #{wgcn_forward.1} parent=0 // pred_check
    _
  $region23: #{wgcn_forward.1} parent=0 // pred_check_branch
    %484 = sbr.rel (0) target = $region25
  $region24: #{wgcn_forward.1} parent=0 // pred_region
    _
  $region25: #{wgcn_forward.1} parent=0 // pred_fallthru
    _
  // Predicated region
  $region26: #{wgcn_forward.1} parent=0 // pred_check
    _
  $region27: #{wgcn_forward.1} parent=0 // pred_check_branch
    %486 = sbr.rel (0) target = $region29
  $region28: #{wgcn_forward.1} parent=0 // pred_region
    _
  $region29: #{wgcn_forward.1} parent=0 // pred_fallthru
    _
  // Predicated region
  $region30: #{wgcn_forward.1} parent=0 // pred_check
    _
  $region31: #{wgcn_forward.1} parent=0 // pred_check_branch
    %488 = sbr.rel (0) target = $region33
  $region32: #{wgcn_forward.1} parent=0 // pred_region
    _
  $region33: #{wgcn_forward.1} parent=0 // pred_fallthru
    _

</llo_original>
